<compile_context>
chip_gen: v5e
topology: v5e:2x2
jax: 0.10.0
libtpu: 0.0.40
codegen_flags: <defaults>
</compile_context>

<pallas_src>
import jax
import jax.numpy as jnp
from jax.experimental import pallas as pl
from jax.experimental.pallas import tpu as pltpu


# Max batch tile (lane axis).  Per-tile VMEM at TB=65536:
#   input (16,TB)*4B = 4 MiB, output (15,TB)*4B = 3.75 MiB, x2 double-buffered
#   ~= 15.5 MiB  -> fits under the explicit 32 MiB vmem_limit on every chip.
TB_MAX = 65536
VMEM_LIMIT_BYTES = 32 * 1024 * 1024


def generator_kernel(xT_ref, w1_ref, b1_ref, w2_ref, b2_ref, oT_ref):
    """One batch tile of the full MLP.  All activations are (features, batch)."""
    xT = xT_ref[...]          # (16, TB)
    w1 = w1_ref[...]          # (16, 16)  PyTorch (out_features, in_features)
    b1 = b1_ref[...]          # (16, 1)   column bias, broadcast across lanes
    w2 = w2_ref[...]          # (15, 16)
    b2 = b2_ref[...]          # (15, 1)

    # Linear(16, 16):  (16,16) @ (16,TB) -> (16,TB)
    h = jnp.dot(w1, xT, preferred_element_type=jnp.float32) + b1
    # LeakyReLU(0.3): slope < 1  =>  max(h, 0.3*h)  (mul + max, no mask vreg)
    h = jnp.maximum(h, 0.3 * h)

    # Linear(16, 15):  (15,16) @ (16,TB) -> (15,TB)
    y = jnp.dot(w2, h, preferred_element_type=jnp.float32) + b2
    # Sigmoid: exp on EUP; approx reciprocal also on EUP (~2^-12 rel err) ->
    # VALU slots stay free.  Use approx=False if callers need tighter sigmoid.
    y = pl.reciprocal(1.0 + jnp.exp(-y), approx=True)

    oT_ref[...] = y.astype(oT_ref.dtype)   # lane-dense (15, TB) store


def generator_forward_feature_major(xT, w1, b1, w2, b2, *,
                                    tb_max=TB_MAX, out_dtype=None):
    """Zero-copy entry point.  xT: (16, B) f32 (features, batch).
    Weights in PyTorch nn.Linear layout: w1:(16,16), b1:(16,), w2:(15,16),
    b2:(15,).  Returns (15, B)."""
    in_dim, B = xT.shape
    hid_dim = w1.shape[0]
    out_dim = w2.shape[0]
    out_dtype = xT.dtype if out_dtype is None else out_dtype

    # Batch tile: multiple of 128 (lane axis); aim for >=2 grid steps when
    # B > 128 so the "parallel" grid axis can use both v7x TensorCores; cap
    # at tb_max for VMEM headroom.  Ragged last tile handled by edge masking.
    tb = min(tb_max, pl.cdiv(B, 2 * 128) * 128)
    grid = (pl.cdiv(B, tb),)

    b1c = b1.reshape(hid_dim, 1)
    b2c = b2.reshape(out_dim, 1)

    flops = B * (2 * in_dim * hid_dim + 2 * hid_dim * out_dim
                 + 3 * hid_dim + 4 * out_dim)
    bytes_accessed = (4 * (B * in_dim
                           + in_dim * hid_dim + hid_dim
                           + hid_dim * out_dim + out_dim)
                      + B * out_dim * jnp.dtype(out_dtype).itemsize)

    yT = pl.pallas_call(
        generator_kernel,
        out_shape=jax.ShapeDtypeStruct((out_dim, B), out_dtype),
        grid=grid,
        in_specs=[
            # activations: streamed over the batch grid (double-buffered)
            pl.BlockSpec((in_dim, tb), lambda i: (0, i)),
            # weights/biases: constant index maps -> VMEM-resident across grid
            pl.BlockSpec((hid_dim, in_dim), lambda i: (0, 0)),
            pl.BlockSpec((hid_dim, 1), lambda i: (0, 0)),
            pl.BlockSpec((out_dim, hid_dim), lambda i: (0, 0)),
            pl.BlockSpec((out_dim, 1), lambda i: (0, 0)),
        ],
        out_specs=pl.BlockSpec((out_dim, tb), lambda i: (0, i)),
        compiler_params=pltpu.CompilerParams(
            dimension_semantics=("parallel",),       # megacore-shard on v7x
            vmem_limit_bytes=VMEM_LIMIT_BYTES),      # large tiles on v5e too
        cost_estimate=pl.CostEstimate(
            flops=flops,
            transcendentals=2 * B * out_dim,         # exp + reciprocal
            bytes_accessed=bytes_accessed),
    )(xT, w1, b1c, w2, b2c)

    return yT


def generator_forward(x, w1, b1, w2, b2, *, tb_max=TB_MAX, out_dtype=None):
    """PyTorch-compatible entry point: x (B, 16) -> (B, 15).
    Pays two layout transposes; callers that can keep data feature-major
    should use generator_forward_feature_major instead."""
    yT = generator_forward_feature_major(
        jnp.transpose(x), w1, b1, w2, b2, tb_max=tb_max, out_dtype=out_dtype)
    return jnp.transpose(yT)


def init_params(key):
    """PyTorch nn.Linear default init: U[-1/sqrt(fan_in), +1/sqrt(fan_in)],
    weights kept in PyTorch (out_features, in_features) layout."""
    k1, k2, k3, k4 = jax.random.split(key, 4)
    bound1 = 1.0 / jnp.sqrt(jnp.float32(16))
    bound2 = 1.0 / jnp.sqrt(jnp.float32(16))
    w1 = jax.random.uniform(k1, (16, 16), jnp.float32, -bound1, bound1)
    b1 = jax.random.uniform(k2, (16,), jnp.float32, -bound1, bound1)
    w2 = jax.random.uniform(k3, (15, 16), jnp.float32, -bound2, bound2)
    b2 = jax.random.uniform(k4, (15,), jnp.float32, -bound2, bound2)
    return w1, b1, w2, b2


def reference_forward(x, w1, b1, w2, b2):
    h = x @ w1.T + b1
    h = jnp.where(h >= 0.0, h, 0.3 * h)
    y = h @ w2.T + b2
    return jax.nn.sigmoid(y)


if __name__ == "__main__":
    key = jax.random.PRNGKey(0)
    k_param, k_x1, k_x2 = jax.random.split(key, 3)
    w1, b1, w2, b2 = init_params(k_param)

    # Small batch: single ragged edge block (B=8 < 128 lanes), grid = (1,).
    x_small = jax.random.normal(k_x1, (8, 16), jnp.float32)
    out_small = jax.block_until_ready(generator_forward(x_small, w1, b1, w2, b2))
    ref_small = reference_forward(x_small, w1, b1, w2, b2)
    assert out_small.shape == (8, 15), out_small.shape
    assert jnp.allclose(out_small, ref_small, atol=2e-3, rtol=2e-3), \
        "mismatch vs pure-JAX reference (small batch)"

    # B=300 with tb_max=128 -> grid of 3 with a ragged last tile (44 columns):
    # explicitly validates the pad-free edge-block path via the feature-major
    # (zero-copy) entry point.
    x_big = jax.random.normal(k_x2, (300, 16), jnp.float32)
    out_big_T = jax.block_until_ready(
        generator_forward_feature_major(
            jnp.transpose(x_big), w1, b1, w2, b2, tb_max=128))
    out_big = jnp.transpose(out_big_T)
    ref_big = reference_forward(x_big, w1, b1, w2, b2)
    assert out_big.shape == (300, 15), out_big.shape
    assert jnp.allclose(out_big, ref_big, atol=2e-3, rtol=2e-3), \
        "mismatch vs pure-JAX reference (ragged batch grid)"

    print("KERNEL_OK")
</pallas_src>

<mosaic_0001>
module attributes {stable_mosaic.version = 11 : i64} {
  func.func @generator_kernel(%arg0: i32, %arg1: memref<16x128xf32, #tpu.memory_space<vmem>>, %arg2: memref<16x16xf32, #tpu.memory_space<vmem>>, %arg3: memref<16x1xf32, #tpu.memory_space<vmem>>, %arg4: memref<15x16xf32, #tpu.memory_space<vmem>>, %arg5: memref<15x1xf32, #tpu.memory_space<vmem>>, %arg6: memref<15x128xf32, #tpu.memory_space<vmem>>) attributes {dimension_semantics = [#tpu.dimension_semantics<parallel>], iteration_bounds = array<i64: 1>, scalar_prefetch = 0 : i64, scratch_operands = 0 : i64, tpu.core_type = #tpu.core_type<tc>, window_params = [{transform_indices = @transform_0, window_bounds = array<i64: 16, 128>}, {pipeline_mode = #tpu.pipeline_mode<synchronous>, transform_indices = @transform_1, window_bounds = array<i64: 16, 16>}, {pipeline_mode = #tpu.pipeline_mode<synchronous>, transform_indices = @transform_2, window_bounds = array<i64: 16, 1>}, {pipeline_mode = #tpu.pipeline_mode<synchronous>, transform_indices = @transform_3, window_bounds = array<i64: 15, 16>}, {pipeline_mode = #tpu.pipeline_mode<synchronous>, transform_indices = @transform_4, window_bounds = array<i64: 15, 1>}, {transform_indices = @transform_5, window_bounds = array<i64: 15, 128>}]} {
    %c0 = arith.constant 0 : index
    %c0_0 = arith.constant 0 : index
    %0 = vector.load %arg1[%c0, %c0_0] : memref<16x128xf32, #tpu.memory_space<vmem>>, vector<16x128xf32>
    %c0_1 = arith.constant 0 : index
    %c0_2 = arith.constant 0 : index
    %1 = vector.load %arg2[%c0_1, %c0_2] : memref<16x16xf32, #tpu.memory_space<vmem>>, vector<16x16xf32>
    %c0_3 = arith.constant 0 : index
    %c0_4 = arith.constant 0 : index
    %2 = vector.load %arg3[%c0_3, %c0_4] : memref<16x1xf32, #tpu.memory_space<vmem>>, vector<16x1xf32>
    %c0_5 = arith.constant 0 : index
    %c0_6 = arith.constant 0 : index
    %3 = vector.load %arg4[%c0_5, %c0_6] : memref<15x16xf32, #tpu.memory_space<vmem>>, vector<15x16xf32>
    %c0_7 = arith.constant 0 : index
    %c0_8 = arith.constant 0 : index
    %4 = vector.load %arg5[%c0_7, %c0_8] : memref<15x1xf32, #tpu.memory_space<vmem>>, vector<15x1xf32>
    %cst = arith.constant dense<0.000000e+00> : vector<16x128xf32>
    %5 = tpu.matmul %1, %0, %cst {dimension_numbers = #tpu.dot_dimension_numbers<[1], [0], [0], [1], [0, 0, 1, 1], [], []>} : vector<16x16xf32>, vector<16x128xf32>, vector<16x128xf32> -> vector<16x128xf32>
    %6 = vector.broadcast %2 : vector<16x1xf32> to vector<16x128xf32>
    %7 = arith.addf %5, %6 : vector<16x128xf32>
    %cst_9 = arith.constant 3.000000e-01 : f32
    %8 = vector.broadcast %cst_9 : f32 to vector<16x128xf32>
    %9 = arith.mulf %8, %7 : vector<16x128xf32>
    %10 = arith.maximumf %7, %9 : vector<16x128xf32>
    %cst_10 = arith.constant dense<0.000000e+00> : vector<15x128xf32>
    %11 = tpu.matmul %3, %10, %cst_10 {dimension_numbers = #tpu.dot_dimension_numbers<[1], [0], [0], [1], [0, 0, 1, 1], [], []>} : vector<15x16xf32>, vector<16x128xf32>, vector<15x128xf32> -> vector<15x128xf32>
    %12 = vector.broadcast %4 : vector<15x1xf32> to vector<15x128xf32>
    %13 = arith.addf %11, %12 : vector<15x128xf32>
    %cst_11 = arith.constant 0.000000e+00 : f32
    %14 = vector.broadcast %cst_11 : f32 to vector<15x128xf32>
    %15 = arith.subf %14, %13 : vector<15x128xf32>
    %16 = math.exp %15 : vector<15x128xf32>
    %cst_12 = arith.constant 1.000000e+00 : f32
    %17 = vector.broadcast %cst_12 : f32 to vector<15x128xf32>
    %18 = arith.addf %17, %16 : vector<15x128xf32>
    %19 = tpu.reciprocal %18 {approx = true} : vector<15x128xf32> -> vector<15x128xf32>
    %c0_13 = arith.constant 0 : index
    %c0_14 = arith.constant 0 : index
    %20 = vector.load %arg6[%c0_13, %c0_14] : memref<15x128xf32, #tpu.memory_space<vmem>>, vector<15x128xf32>
    tpu.vector_store %arg6[%c0_13, %c0_14], %19 {strides = array<i32>} : memref<15x128xf32, #tpu.memory_space<vmem>>, vector<15x128xf32>,
    return
  }
  func.func @transform_0(%arg0: i32) -> (i32, i32) {
    %c0_i32 = arith.constant 0 : i32
    %c0_i32_0 = arith.constant 0 : i32
    return %c0_i32, %arg0 : i32, i32
  }
  func.func @transform_1(%arg0: i32) -> (i32, i32) {
    %c0_i32 = arith.constant 0 : i32
    %c0_i32_0 = arith.constant 0 : i32
    %c0_i32_1 = arith.constant 0 : i32
    return %c0_i32, %c0_i32_0 : i32, i32
  }
  func.func @transform_2(%arg0: i32) -> (i32, i32) {
    %c0_i32 = arith.constant 0 : i32
    %c0_i32_0 = arith.constant 0 : i32
    %c0_i32_1 = arith.constant 0 : i32
    return %c0_i32, %c0_i32_0 : i32, i32
  }
  func.func @transform_3(%arg0: i32) -> (i32, i32) {
    %c0_i32 = arith.constant 0 : i32
    %c0_i32_0 = arith.constant 0 : i32
    %c0_i32_1 = arith.constant 0 : i32
    return %c0_i32, %c0_i32_0 : i32, i32
  }
  func.func @transform_4(%arg0: i32) -> (i32, i32) {
    %c0_i32 = arith.constant 0 : i32
    %c0_i32_0 = arith.constant 0 : i32
    %c0_i32_1 = arith.constant 0 : i32
    return %c0_i32, %c0_i32_0 : i32, i32
  }
  func.func @transform_5(%arg0: i32) -> (i32, i32) {
    %c0_i32 = arith.constant 0 : i32
    %c0_i32_0 = arith.constant 0 : i32
    return %c0_i32, %arg0 : i32, i32
  }
}

</mosaic_0001>

<llo_original>
// kernel: tpu_custom_call.1
$region0: #{tpu_custom_call.1}
  #allocation0 [shape = 'u32[]', space=smem, size = 0x4, offset = 0x4, fixed_abs, tag = 'smem constant byte address 0x4 - core index']
  #allocation1 [shape = 'u32[72,128]{1,0:T(1,128)}', space=vmem, size = 0x9000, scoped, tag = 'internal scratch']
  %s0 = inlined_call_operand.vmem [shape: f32[16,8], index: 0, kind: input, shape index: {}]
  %s1 = inlined_call_operand.vmem [shape: f32[16,16], index: 1, kind: input, shape index: {}]
  %s2 = inlined_call_operand.vmem [shape: f32[16,1], index: 2, kind: input, shape index: {}]
  %s3 = inlined_call_operand.vmem [shape: f32[15,16], index: 3, kind: input, shape index: {}]
  %s4 = inlined_call_operand.vmem [shape: f32[15,1], index: 4, kind: input, shape index: {}]
  %s5 = inlined_call_operand.vmem [shape: f32[15,8], index: 5, kind: output, shape index: {}]
  %s6 = sld [smem:[#allocation0]]
  $region30: #{tpu_custom_call.1} parent=0
    _
  %s8 = ssub.s32 1, %s6
  %s9 = scalar_select 0, %s8, %s6
  // Predicated region
  $region2: #{tpu_custom_call.1} parent=0 // pred_check
    _
  $region3: #{tpu_custom_call.1} parent=0 // pred_check_branch
    %11 = sbr.rel (0) target = $region5
  $region4: #{tpu_custom_call.1} parent=0 // pred_region
    _
  $region5: #{tpu_custom_call.1} parent=0 // pred_fallthru
    _
  // Predicated region
  $region6: #{tpu_custom_call.1} parent=0 // pred_check
    _
  $region7: #{tpu_custom_call.1} parent=0 // pred_check_branch
    %13 = sbr.rel (0) target = $region9
  $region8: #{tpu_custom_call.1} parent=0 // pred_region
    _
  $region9: #{tpu_custom_call.1} parent=0 // pred_fallthru
    _
  // Predicated region
  $region10: #{tpu_custom_call.1} parent=0 // pred_check
    _
  $region11: #{tpu_custom_call.1} parent=0 // pred_check_branch
    %15 = sbr.rel (0) target = $region13
  $region12: #{tpu_custom_call.1} parent=0 // pred_region
    _
  $region13: #{tpu_custom_call.1} parent=0 // pred_fallthru
    _
  // Predicated region
  $region14: #{tpu_custom_call.1} parent=0 // pred_check
    _
  $region15: #{tpu_custom_call.1} parent=0 // pred_check_branch
    %17 = sbr.rel (0) target = $region17
  $region16: #{tpu_custom_call.1} parent=0 // pred_region
    _
  $region17: #{tpu_custom_call.1} parent=0 // pred_fallthru
    _
  // Predicated region
  $region18: #{tpu_custom_call.1} parent=0 // pred_check
    _
  $region19: #{tpu_custom_call.1} parent=0 // pred_check_branch
    %19 = sbr.rel (0) target = $region21
  $region20: #{tpu_custom_call.1} parent=0 // pred_region
    _
  $region21: #{tpu_custom_call.1} parent=0 // pred_fallthru
    _
  %v20 = vld [vmem:[%s0] sm:$0xff]
  %v21 = vld [vmem:[%s0 + $0x8] sm:$0xff]
  %v22 = vld [vmem:[%s1] sm:$0xff]
  %v23 = vld [vmem:[%s1 + $0x8] sm:$0xff]
  %v24 = vld [vmem:[%s2] sm:$0xff]
  %v25 = vld [vmem:[%s2 + $0x8] sm:$0xff]
  %v26 = vld [vmem:[%s3] sm:$0xff]
  %v27 = vld [vmem:[%s3 + $0x8] sm:$0x7f]
  %v28 = vld [vmem:[%s4] sm:$0xff]
  %v29 = vld [vmem:[%s4 + $0x8] sm:$0x7f]
  %31 = vset.pattern.permute.xlu0 0
  %32 = vperm.xlu0 %31, %v24
  %v33 = vpop.permute.xlu0 %32
  %36 = vset.pattern.permute.xlu0 0
  %37 = vperm.xlu0 %36, %v25
  %v38 = vpop.permute.xlu0 %37
  %vm40 = vcmask 130048
  %v42 = vsel %vm40, %v22, 0
  %v45 = vsel %vm40, %v23, 0
  %47 = vmatpush.msra.mxu0 0.0
  %48 = vmatpush.msra.mxu0 0.0
  %49 = vmatpush.msra.mxu0 0.0
  %50 = vmatpush.msra.mxu0 0.0
  %51 = vmatpush.msra.mxu0 0.0
  %52 = vmatpush.msra.mxu0 0.0
  %53 = vmatpush.msra.mxu0 0.0
  %54 = vmatpush.msra.mxu0 0.0
  %55 = vmatpush.msra.mxu0 0.0
  %56 = vmatpush.msra.mxu0 0.0
  %57 = vmatpush.msra.mxu0 0.0
  %58 = vmatpush.msra.mxu0 0.0
  %59 = vmatpush.msra.mxu0 0.0
  %60 = vmatpush.msra.mxu0 0.0
  %61 = vmatpush.msra.mxu0 %v21
  %62 = vmatpush.msra.mxu0 %v20
  %63 = vmatmul.f32.gmra.mxu0 %v42
  %v64 = vpop.f32.mrf.mxu0
  %v65 = vadd.f32 %v33, %v64
  %66 = vmatmul.f32.gmra.mxu0 %v45
  %v67 = vpop.f32.mrf.mxu0
  %v68 = vadd.f32 %v38, %v67
  %69 = vdwg.mxu0
  %v70 = vmul.f32 %v65, 0.3
  %v71 = vmul.f32 %v68, 0.3
  %v72 = vmax.f32 %v65, %v70
  %v73 = vmax.f32 %v68, %v71
  %75 = vset.pattern.permute.xlu0 0
  %76 = vperm.xlu0 %75, %v28
  %v77 = vpop.permute.xlu0 %76
  %80 = vset.pattern.permute.xlu0 0
  %81 = vperm.xlu0 %80, %v29
  %v82 = vpop.permute.xlu0 %81
  %v85 = vsel %vm40, %v26, 0
  %v88 = vsel %vm40, %v27, 0
  %90 = vmatpush.msra.mxu0 0.0
  %91 = vmatpush.msra.mxu0 0.0
  %92 = vmatpush.msra.mxu0 0.0
  %93 = vmatpush.msra.mxu0 0.0
  %94 = vmatpush.msra.mxu0 0.0
  %95 = vmatpush.msra.mxu0 0.0
  %96 = vmatpush.msra.mxu0 0.0
  %97 = vmatpush.msra.mxu0 0.0
  %98 = vmatpush.msra.mxu0 0.0
  %99 = vmatpush.msra.mxu0 0.0
  %100 = vmatpush.msra.mxu0 0.0
  %101 = vmatpush.msra.mxu0 0.0
  %102 = vmatpush.msra.mxu0 0.0
  %103 = vmatpush.msra.mxu0 0.0
  %104 = vmatpush.msra.mxu0 %v73
  %105 = vmatpush.msra.mxu0 %v72
  %106 = vmatmul.f32.gmra.mxu0 %v85
  %v107 = vpop.f32.mrf.mxu0
  %v108 = vadd.f32 %v77, %v107
  %109 = vmatmul.f32.gmra.mxu0 %v88
  %v110 = vpop.f32.mrf.mxu0
  %v111 = vadd.f32 %v82, %v110
  %112 = vdwg.mxu0
  %v113 = vsub.f32 0.0, %v108
  %v114 = vsub.f32 0.0, %v111
  %v115 = vmul.f32 %v113, 1.442695
  %v116 = vpow.pop %v115
  %v117 = vmul.f32 %v114, 1.442695
  %v118 = vpow.pop %v117
  %v119 = vadd.f32 %v116, 1.0
  %v120 = vadd.f32 %v118, 1.0
  %v121 = vrcp.pop %v119
  %v122 = vrcp.pop %v120
  %123 = vst [vmem:[%s5] sm:$0xff] %v121
  %124 = vst [vmem:[%s5 + $0x8] sm:$0x7f] %v122
  // Predicated region
  $region22: #{tpu_custom_call.1} parent=0 // pred_check
    _
  $region23: #{tpu_custom_call.1} parent=0 // pred_check_branch
    %126 = sbr.rel (0) target = $region25
  $region24: #{tpu_custom_call.1} parent=0 // pred_region
    _
  $region25: #{tpu_custom_call.1} parent=0 // pred_fallthru
    _
  // Predicated region
  $region26: #{tpu_custom_call.1} parent=0 // pred_check
    _
  $region27: #{tpu_custom_call.1} parent=0 // pred_check_branch
    %128 = sbr.rel (0) target = $region29
  $region28: #{tpu_custom_call.1} parent=0 // pred_region
    _
  $region29: #{tpu_custom_call.1} parent=0 // pred_fallthru
    _

</llo_original>
